<compile_context>
chip_gen: v7x
topology: tpu7x:2x2x1
jax: 0.10.0
libtpu: 0.0.40
codegen_flags: <defaults>
</compile_context>

<pallas_src>
import math
import functools

import jax
import jax.numpy as jnp
from jax.experimental import pallas as pl
from jax.experimental.pallas import tpu as pltpu


def _pe_kernel(x_ref, pe_ref, o_ref, *, enable_concept: bool, seq_len: int):
    x = x_ref[...]                       # (S, TB, TD) float32
    pe = pe_ref[...][:, None, :]         # (S, 1, TD) -> broadcast over batch

    if enable_concept:
        # mean over the sequence axis (dim 0), keepdims
        mean = jnp.mean(x, axis=0, keepdims=True)                    # (1, TB, TD)
        centered = x - mean
        # torch.std default is unbiased (ddof = 1)
        inv_nm1 = jnp.float32(1.0 / max(seq_len - 1, 1))
        var = jnp.sum(centered * centered, axis=0, keepdims=True) * inv_nm1
        std = jnp.sqrt(var)                                          # (1, TB, TD)
        out = x + pe + mean + std
    else:
        out = x + pe

    # dropout(p=0.1) in eval mode == identity
    o_ref[...] = out.astype(o_ref.dtype)


def build_pe_table(d_model: int, max_seq_length: int) -> jnp.ndarray:
    """Sinusoidal positional-encoding buffer, lane-dense shape (max_seq_length, d_model)."""
    position = jnp.arange(max_seq_length, dtype=jnp.float32)[:, None]   # (L, 1)
    div_term = jnp.exp(
        jnp.arange(0, d_model, 2, dtype=jnp.float32) * (-math.log(10000.0) / d_model)
    )                                                                    # (D/2,)
    pe = jnp.zeros((max_seq_length, d_model), dtype=jnp.float32)
    pe = pe.at[:, 0::2].set(jnp.sin(position * div_term))
    pe = pe.at[:, 1::2].set(jnp.cos(position * div_term))
    return pe                                                            # (L, D)


def _choose_tiles(S: int, B: int, D: int, budget_bytes: int):
    """Pick (TB, TD) tile sizes: multiples of (8, 128) when divisibility allows,
    otherwise the full dim; shrink to keep the x block within ~budget_bytes."""
    elt = 4  # float32

    # Lane (feature) tile: multiple of 128 that divides D, else full D.
    if D % 128 == 0:
        TD = D
        while TD > 128 and S * min(B, 8) * TD * elt > budget_bytes:
            nxt = TD // 2
            if nxt % 128 == 0 and D % nxt == 0:
                TD = nxt
            else:
                break
    else:
        TD = D

    # Sublane (batch) tile: multiple of 8 that divides B, else full B.
    if B % 8 == 0:
        TB = B
        while TB > 8 and S * TB * TD * elt > budget_bytes:
            nxt = TB // 2
            if nxt % 8 == 0 and B % nxt == 0:
                TB = nxt
            else:
                break
    else:
        TB = B

    return TB, TD


def positional_encoding_forward(x: jnp.ndarray,
                                pe_table: jnp.ndarray,
                                enable_concept: bool,
                                *,
                                tile_budget_bytes: int = 4 * 1024 * 1024) -> jnp.ndarray:
    """x: (seq_len, batch, d_model) float32. Returns same shape/dtype."""
    S, B, D = x.shape
    pe = pe_table[:S]                                                    # (S, D), lane-dense

    TB, TD = _choose_tiles(S, B, D, tile_budget_bytes)
    grid = (D // TD, B // TB)   # feature axis outermost -> pe resident across batch tiles

    kernel = functools.partial(_pe_kernel, enable_concept=enable_concept, seq_len=S)

    flops = (7 if enable_concept else 1) * S * B * D
    cost = pl.CostEstimate(
        flops=flops,
        transcendentals=(B * D) if enable_concept else 0,
        bytes_accessed=2 * S * B * D * 4 + S * D * 4,
    )

    return pl.pallas_call(
        kernel,
        out_shape=jax.ShapeDtypeStruct((S, B, D), x.dtype),
        grid_spec=pltpu.PrefetchScalarGridSpec(
            num_scalar_prefetch=0,
            grid=grid,
            in_specs=[
                pl.BlockSpec((S, TB, TD), lambda d, b: (0, b, d)),
                pl.BlockSpec((S, TD), lambda d, b: (0, d)),
            ],
            out_specs=pl.BlockSpec((S, TB, TD), lambda d, b: (0, b, d)),
        ),
        compiler_params=pltpu.CompilerParams(
            dimension_semantics=("parallel", "parallel"),
        ),
        cost_estimate=cost,
    )(x, pe)


def _reference(x, pe_table, enable_concept):
    """Pure-JAX reference mirroring the PyTorch forward (eval-mode dropout)."""
    S = x.shape[0]
    pe = pe_table[:S][:, None, :]          # (S, 1, D) broadcasts over batch
    if enable_concept:
        mean = jnp.mean(x, axis=0, keepdims=True)
        std = jnp.std(x, axis=0, keepdims=True, ddof=1)
        return x + pe + mean + std
    return x + pe


if __name__ == "__main__":
    key = jax.random.PRNGKey(0)

    # --- Small shape consistent with the module (matches torch layout) ---
    d_model, max_seq_length, seq_len, batch = 32, 64, 8, 2
    x = jax.random.normal(key, (seq_len, batch, d_model), dtype=jnp.float32)
    pe_table = build_pe_table(d_model, max_seq_length)

    out = jax.block_until_ready(positional_encoding_forward(x, pe_table, True))
    ref = _reference(x, pe_table, True)
    assert out.shape == (seq_len, batch, d_model)
    assert jnp.allclose(out, ref, atol=1e-5, rtol=1e-5), "mismatch vs reference (concept)"

    out2 = jax.block_until_ready(positional_encoding_forward(x, pe_table, False))
    ref2 = _reference(x, pe_table, False)
    assert jnp.allclose(out2, ref2, atol=1e-5, rtol=1e-5), "mismatch vs reference (no concept)"

    # --- Exercise the tiled multi-block grid path (tiny VMEM budget forces tiling) ---
    d_model2, seq_len2, batch2 = 512, 8, 16
    key2 = jax.random.PRNGKey(1)
    x2 = jax.random.normal(key2, (seq_len2, batch2, d_model2), dtype=jnp.float32)
    pe_table2 = build_pe_table(d_model2, max_seq_length)

    out3 = jax.block_until_ready(
        positional_encoding_forward(x2, pe_table2, True, tile_budget_bytes=64 * 1024))
    ref3 = _reference(x2, pe_table2, True)
    assert jnp.allclose(out3, ref3, atol=1e-5, rtol=1e-5), "mismatch vs reference (tiled)"

    print("KERNEL_OK")
</pallas_src>

<mosaic_0001>
module attributes {stable_mosaic.version = 11 : i64} {
  func.func @_pe_kernel(%arg0: i32, %arg1: i32, %arg2: memref<8x2x32xf32, #tpu.memory_space<vmem>>, %arg3: memref<8x32xf32, #tpu.memory_space<vmem>>, %arg4: memref<8x2x32xf32, #tpu.memory_space<vmem>>) attributes {dimension_semantics = [#tpu.dimension_semantics<parallel>, #tpu.dimension_semantics<parallel>], iteration_bounds = array<i64: 1, 1>, scalar_prefetch = 0 : i64, scratch_operands = 0 : i64, tpu.core_type = #tpu.core_type<tc>, window_params = [{transform_indices = @transform_0, window_bounds = array<i64: 8, 2, 32>}, {transform_indices = @transform_1, window_bounds = array<i64: 8, 32>}, {transform_indices = @transform_2, window_bounds = array<i64: 8, 2, 32>}]} {
    %c0 = arith.constant 0 : index
    %c0_0 = arith.constant 0 : index
    %c0_1 = arith.constant 0 : index
    %0 = vector.load %arg2[%c0, %c0_0, %c0_1] : memref<8x2x32xf32, #tpu.memory_space<vmem>>, vector<8x2x32xf32>
    %c0_2 = arith.constant 0 : index
    %c0_3 = arith.constant 0 : index
    %1 = vector.load %arg3[%c0_2, %c0_3] : memref<8x32xf32, #tpu.memory_space<vmem>>, vector<8x32xf32>
    %2 = vector.shape_cast %1 : vector<8x32xf32> to vector<8x1x32xf32>
    %cst = arith.constant dense<0.000000e+00> : vector<2x32xf32>
    %3 = vector.multi_reduction <add>, %0, %cst [0] : vector<8x2x32xf32> to vector<2x32xf32>
    %4 = vector.shape_cast %3 : vector<2x32xf32> to vector<1x2x32xf32>
    %cst_4 = arith.constant 8.000000e+00 : f32
    %5 = vector.broadcast %cst_4 : f32 to vector<1x2x32xf32>
    %6 = arith.divf %4, %5 : vector<1x2x32xf32>
    %7 = vector.broadcast %6 : vector<1x2x32xf32> to vector<8x2x32xf32>
    %8 = arith.subf %0, %7 : vector<8x2x32xf32>
    %9 = arith.mulf %8, %8 : vector<8x2x32xf32>
    %cst_5 = arith.constant dense<0.000000e+00> : vector<2x32xf32>
    %10 = vector.multi_reduction <add>, %9, %cst_5 [0] : vector<8x2x32xf32> to vector<2x32xf32>
    %11 = vector.shape_cast %10 : vector<2x32xf32> to vector<1x2x32xf32>
    %cst_6 = arith.constant 0.142857149 : f32
    %12 = vector.broadcast %cst_6 : f32 to vector<1x2x32xf32>
    %13 = arith.mulf %11, %12 : vector<1x2x32xf32>
    %14 = math.sqrt %13 : vector<1x2x32xf32>
    %15 = vector.broadcast %2 : vector<8x1x32xf32> to vector<8x2x32xf32>
    %16 = arith.addf %0, %15 : vector<8x2x32xf32>
    %17 = vector.broadcast %6 : vector<1x2x32xf32> to vector<8x2x32xf32>
    %18 = arith.addf %16, %17 : vector<8x2x32xf32>
    %19 = vector.broadcast %14 : vector<1x2x32xf32> to vector<8x2x32xf32>
    %20 = arith.addf %18, %19 : vector<8x2x32xf32>
    %c0_7 = arith.constant 0 : index
    %c0_8 = arith.constant 0 : index
    %c0_9 = arith.constant 0 : index
    %21 = vector.load %arg4[%c0_7, %c0_8, %c0_9] : memref<8x2x32xf32, #tpu.memory_space<vmem>>, vector<8x2x32xf32>
    tpu.vector_store %arg4[%c0_7, %c0_8, %c0_9], %20 {strides = array<i32>} : memref<8x2x32xf32, #tpu.memory_space<vmem>>, vector<8x2x32xf32>,
    return
  }
  func.func @transform_0(%arg0: i32, %arg1: i32) -> (i32, i32, i32) {
    %c0_i32 = arith.constant 0 : i32
    %c0_i32_0 = arith.constant 0 : i32
    return %c0_i32, %arg1, %arg0 : i32, i32, i32
  }
  func.func @transform_1(%arg0: i32, %arg1: i32) -> (i32, i32) {
    %c0_i32 = arith.constant 0 : i32
    %c0_i32_0 = arith.constant 0 : i32
    return %c0_i32, %arg0 : i32, i32
  }
  func.func @transform_2(%arg0: i32, %arg1: i32) -> (i32, i32, i32) {
    %c0_i32 = arith.constant 0 : i32
    %c0_i32_0 = arith.constant 0 : i32
    return %c0_i32, %arg1, %arg0 : i32, i32, i32
  }
}

</mosaic_0001>

<llo_original>
// kernel: tpu_custom_call.1
$region0: #{tpu_custom_call.1}
  #allocation0 [shape = 'u32[]', space=smem, size = 0x4, offset = 0x4, fixed_abs, tag = 'smem constant byte address 0x4 - core index']
  #allocation1 [shape = 'u32[144,128]{1,0:T(1,128)}', space=vmem, size = 0x12000, scoped, tag = 'internal scratch']
  %s0 = inlined_call_operand.hbm [shape: f32[8,2,32], index: 0, kind: input, shape index: {}]
  %s1 = inlined_call_operand.hbm [shape: f32[8,32], index: 1, kind: input, shape index: {}]
  %s2 = inlined_call_operand.hbm [shape: f32[8,2,32], index: 2, kind: output, shape index: {}]
  %s3 = sld [smem:[#allocation0]]
  $region26: #{tpu_custom_call.1} parent=0
    _
  %s5 = ssub.s32 1, %s3
  %s6 = scalar_select 0, %s5, %s3
  $region1: #{tpu_custom_call.1} parent=0
    #allocation2 [shape = 'u8[8192]{0}', space=vmem, size = 0x2000, scoped, tag = 'input window, operand 0, single buffered']
    #allocation3 [shape = 's32[1]{0}', space=sflag, size = 0x4, scoped, tag = 'scoped memory for tpu_custom_call.1']
    #allocation4 [shape = 's32[1]{0}', space=sflag, size = 0x4, scoped, tag = 'scoped memory for tpu_custom_call.1']
    #allocation5 [shape = 'u8[4096]{0}', space=vmem, size = 0x1000, scoped, tag = 'input window, operand 1, single buffered']
    #allocation6 [shape = 's32[1]{0}', space=sflag, size = 0x4, scoped, tag = 'scoped memory for tpu_custom_call.1']
    #allocation7 [shape = 'u8[8192]{0}', space=vmem, size = 0x2000, scoped, tag = 'output window, operand 0, single buffered']
    %7 = vsyncpa [#allocation3], 0
    %8 = vsyncpa [#allocation6], 0
    %9 = vsyncpa [#allocation4], 0
    // Predicated region
    $region2: #{tpu_custom_call.1} parent=1 // pred_check
      _
    $region3: #{tpu_custom_call.1} parent=1 // pred_check_branch
      %11 = sbr.rel (0) target = $region5
    $region4: #{tpu_custom_call.1} parent=1 // pred_region
      %s13 = ssub.s32 256, 256
      %14 = vsyncadd [#allocation3], %s13
      %s15 = sshll.u32 [#allocation2], 4
      %s16 = int_to_ptr.vmem [resolvable:$true] %s15
      %21 = dma.hbm_to_vmem [thread:$0]  %s0, 256, %s16, [#allocation3], 32, 32, 2
    $region5: #{tpu_custom_call.1} parent=1 // pred_fallthru
      _
    // Predicated region
    $region6: #{tpu_custom_call.1} parent=1 // pred_check
      _
    $region7: #{tpu_custom_call.1} parent=1 // pred_check_branch
      %23 = sbr.rel (0) target = $region9
    $region8: #{tpu_custom_call.1} parent=1 // pred_region
      %s25 = ssub.s32 128, 128
      %26 = vsyncadd [#allocation6], %s25
      %s28 = sshll.u32 [#allocation5], 4
      %s29 = int_to_ptr.vmem [resolvable:$true] %s28
      %31 = dma.hbm_to_vmem [thread:$0]  %s1, 128, %s29, [#allocation6]
    $region9: #{tpu_custom_call.1} parent=1 // pred_fallthru
      _
    // Predicated region
    $region10: #{tpu_custom_call.1} parent=1 // pred_check
      _
    $region11: #{tpu_custom_call.1} parent=1 // pred_check_branch
      %33 = sbr.rel (0) target = $region13
    $region12: #{tpu_custom_call.1} parent=1 // pred_region
      %34 = dma.done [#allocation3], 256
    $region13: #{tpu_custom_call.1} parent=1 // pred_fallthru
      _
    // Predicated region
    $region14: #{tpu_custom_call.1} parent=1 // pred_check
      _
    $region15: #{tpu_custom_call.1} parent=1 // pred_check_branch
      %36 = sbr.rel (0) target = $region17
    $region16: #{tpu_custom_call.1} parent=1 // pred_region
      %37 = dma.done [#allocation6], 128
    $region17: #{tpu_custom_call.1} parent=1 // pred_fallthru
      _
    %v38 = vld [vmem:[#allocation2] sm:$0x3]
    %v39 = vld [vmem:[#allocation2 + $0x2] sm:$0x3]
    %v40 = vld [vmem:[#allocation2 + $0x4] sm:$0x3]
    %v41 = vld [vmem:[#allocation2 + $0x6] sm:$0x3]
    %v42 = vld [vmem:[#allocation2 + $0x8] sm:$0x3]
    %v43 = vld [vmem:[#allocation2 + $0xa] sm:$0x3]
    %v44 = vld [vmem:[#allocation2 + $0xc] sm:$0x3]
    %v45 = vld [vmem:[#allocation2 + $0xe] sm:$0x3]
    %v46 = vld [vmem:[#allocation5] sm:$0xff]
    %v48 = vcombine.high %v46, %v46
    %v50 = vunpack.c.l.s4 1966171168
    %v51 = vunpack.c.0.s8 %v50
    %v52 = vlaneseq
    %v53 = vshrl.u32 %v52, 7
    %v54 = vsub.s32 %v51, %v53
    %v55 = vrot.slane %v46, %v54
    %v57 = vunpack.c.l.s4 1966171168
    %v58 = vunpack.c.0.s8 %v57
    %v59 = vlaneseq
    %v60 = vshrl.u32 %v59, 7
    %v61 = vsub.s32 %v58, %v60
    %v62 = vrot.slane %v48, %v61
    %v63 = vcombine.high %v55, %v55
    %v64 = vcombine.high %v62, %v62
    %v66 = vunpack.c.l.s4 1966171168
    %v67 = vunpack.c.0.s8 %v66
    %v68 = vlaneseq
    %v69 = vshrl.u32 %v68, 7
    %v70 = vsub.s32 %v67, %v69
    %v71 = vrot.slane %v55, %v70
    %v73 = vunpack.c.l.s4 1966171168
    %v74 = vunpack.c.0.s8 %v73
    %v75 = vlaneseq
    %v76 = vshrl.u32 %v75, 7
    %v77 = vsub.s32 %v74, %v76
    %v78 = vrot.slane %v62, %v77
    %v80 = vunpack.c.l.s4 1966171168
    %v81 = vunpack.c.0.s8 %v80
    %v82 = vlaneseq
    %v83 = vshrl.u32 %v82, 7
    %v84 = vsub.s32 %v81, %v83
    %v85 = vrot.slane %v63, %v84
    %v87 = vunpack.c.l.s4 1966171168
    %v88 = vunpack.c.0.s8 %v87
    %v89 = vlaneseq
    %v90 = vshrl.u32 %v89, 7
    %v91 = vsub.s32 %v88, %v90
    %v92 = vrot.slane %v64, %v91
    %v93 = vcombine.high %v71, %v71
    %v94 = vcombine.high %v78, %v78
    %v95 = vcombine.high %v85, %v85
    %v96 = vcombine.high %v92, %v92
    %vm97 = vcmask 254976
    %v98 = vsel %vm97, %v38, 0.0
    %v99 = vsel %vm97, %v39, 0.0
    %v100 = vadd.f32 %v98, %v99
    %v101 = vsel %vm97, %v40, 0.0
    %v102 = vadd.f32 %v100, %v101
    %v103 = vsel %vm97, %v41, 0.0
    %v104 = vadd.f32 %v102, %v103
    %v105 = vsel %vm97, %v42, 0.0
    %v106 = vadd.f32 %v104, %v105
    %v107 = vsel %vm97, %v43, 0.0
    %v108 = vadd.f32 %v106, %v107
    %v109 = vsel %vm97, %v44, 0.0
    %v110 = vadd.f32 %v108, %v109
    %v111 = vsel %vm97, %v45, 0.0
    %v112 = vadd.f32 %v110, %v111
    %v113 = vrcp.pop 8.0
    %v114 = vmul.f32 %v112, %v113
    %v115 = vsub.f32 %v38, %v114
    %v116 = vsub.f32 %v39, %v114
    %v117 = vsub.f32 %v40, %v114
    %v118 = vsub.f32 %v41, %v114
    %v119 = vsub.f32 %v42, %v114
    %v120 = vsub.f32 %v43, %v114
    %v121 = vsub.f32 %v44, %v114
    %v122 = vsub.f32 %v45, %v114
    %v123 = vmul.f32 %v115, %v115
    %v124 = vmul.f32 %v116, %v116
    %v125 = vmul.f32 %v117, %v117
    %v126 = vmul.f32 %v118, %v118
    %v127 = vmul.f32 %v119, %v119
    %v128 = vmul.f32 %v120, %v120
    %v129 = vmul.f32 %v121, %v121
    %v130 = vmul.f32 %v122, %v122
    %v131 = vsel %vm97, %v123, 0.0
    %v132 = vsel %vm97, %v124, 0.0
    %v133 = vadd.f32 %v131, %v132
    %v134 = vsel %vm97, %v125, 0.0
    %v135 = vadd.f32 %v133, %v134
    %v136 = vsel %vm97, %v126, 0.0
    %v137 = vadd.f32 %v135, %v136
    %v138 = vsel %vm97, %v127, 0.0
    %v139 = vadd.f32 %v137, %v138
    %v140 = vsel %vm97, %v128, 0.0
    %v141 = vadd.f32 %v139, %v140
    %v142 = vsel %vm97, %v129, 0.0
    %v143 = vadd.f32 %v141, %v142
    %v144 = vsel %vm97, %v130, 0.0
    %v145 = vadd.f32 %v143, %v144
    %v146 = vmul.f32 %v145, 0.14285715
    %v147 = vrsqrt.pop %v146
    %v148 = vmul.f32 %v146, %v147
    %vm149 = vcmp.eq.f32.partialorder %v146, inf
    %v150 = vsel %vm149, %v146, %v148
    %vm151 = vcmp.eq.f32.partialorder %v146, 0.0
    %v152 = vand.u32 %v146, 2147483648
    %v153 = vsel %vm151, %v152, %v150
    %v154 = vlaneseq
    %v155 = vshrl.u32 %v154, 7
    %v156 = vsub.s32 0, %v155
    %v157 = vrot.slane %v71, %v156
    %v158 = vlaneseq
    %v159 = vshrl.u32 %v158, 7
    %v160 = vsub.s32 0, %v159
    %v161 = vrot.slane %v85, %v160
    %v162 = vlaneseq
    %v163 = vshrl.u32 %v162, 7
    %v164 = vsub.s32 0, %v163
    %v165 = vrot.slane %v93, %v164
    %v166 = vlaneseq
    %v167 = vshrl.u32 %v166, 7
    %v168 = vsub.s32 0, %v167
    %v169 = vrot.slane %v95, %v168
    %v170 = vlaneseq
    %v171 = vshrl.u32 %v170, 7
    %v172 = vsub.s32 0, %v171
    %v173 = vrot.slane %v78, %v172
    %v174 = vlaneseq
    %v175 = vshrl.u32 %v174, 7
    %v176 = vsub.s32 0, %v175
    %v177 = vrot.slane %v92, %v176
    %v178 = vlaneseq
    %v179 = vshrl.u32 %v178, 7
    %v180 = vsub.s32 0, %v179
    %v181 = vrot.slane %v94, %v180
    %v182 = vlaneseq
    %v183 = vshrl.u32 %v182, 7
    %v184 = vsub.s32 0, %v183
    %v185 = vrot.slane %v96, %v184
    %v194 = vadd.f32 %v38, %v157
    %v195 = vadd.f32 %v39, %v161
    %v196 = vadd.f32 %v40, %v165
    %v197 = vadd.f32 %v41, %v169
    %v198 = vadd.f32 %v42, %v173
    %v199 = vadd.f32 %v43, %v177
    %v200 = vadd.f32 %v44, %v181
    %v201 = vadd.f32 %v45, %v185
    %v202 = vadd.f32 %v194, %v114
    %v203 = vadd.f32 %v195, %v114
    %v204 = vadd.f32 %v196, %v114
    %v205 = vadd.f32 %v197, %v114
    %v206 = vadd.f32 %v198, %v114
    %v207 = vadd.f32 %v199, %v114
    %v208 = vadd.f32 %v200, %v114
    %v209 = vadd.f32 %v201, %v114
    %v210 = vadd.f32 %v202, %v153
    %v211 = vadd.f32 %v203, %v153
    %v212 = vadd.f32 %v204, %v153
    %v213 = vadd.f32 %v205, %v153
    %v214 = vadd.f32 %v206, %v153
    %v215 = vadd.f32 %v207, %v153
    %v216 = vadd.f32 %v208, %v153
    %v217 = vadd.f32 %v209, %v153
    %218 = vst.msk [vmem:[#allocation7] sm:$0x3] %vm97, %v210
    %219 = vst.msk [vmem:[#allocation7 + $0x2] sm:$0x3] %vm97, %v211
    %220 = vst.msk [vmem:[#allocation7 + $0x4] sm:$0x3] %vm97, %v212
    %221 = vst.msk [vmem:[#allocation7 + $0x6] sm:$0x3] %vm97, %v213
    %222 = vst.msk [vmem:[#allocation7 + $0x8] sm:$0x3] %vm97, %v214
    %223 = vst.msk [vmem:[#allocation7 + $0xa] sm:$0x3] %vm97, %v215
    %224 = vst.msk [vmem:[#allocation7 + $0xc] sm:$0x3] %vm97, %v216
    %225 = vst.msk [vmem:[#allocation7 + $0xe] sm:$0x3] %vm97, %v217
    // Predicated region
    $region18: #{tpu_custom_call.1} parent=1 // pred_check
      _
    $region19: #{tpu_custom_call.1} parent=1 // pred_check_branch
      %227 = sbr.rel (0) target = $region21
    $region20: #{tpu_custom_call.1} parent=1 // pred_region
      %s229 = ssub.s32 256, 256
      %230 = vsyncadd [#allocation4], %s229
      %s231 = sshll.u32 [#allocation7], 4
      %s232 = int_to_ptr.vmem [resolvable:$true] %s231
      %237 = dma.vmem_to_hbm [thread:$0]  %s232, 256, %s2, [#allocation4], 32, 32, 2
    $region21: #{tpu_custom_call.1} parent=1 // pred_fallthru
      _
    // Predicated region
    $region22: #{tpu_custom_call.1} parent=1 // pred_check
      _
    $region23: #{tpu_custom_call.1} parent=1 // pred_check_branch
      %239 = sbr.rel (0) target = $region25
    $region24: #{tpu_custom_call.1} parent=1 // pred_region
      %240 = dma.done [#allocation4], 256
    $region25: #{tpu_custom_call.1} parent=1 // pred_fallthru
      _
    %241 = vsyncpa [#allocation3], 1
    %242 = vsyncpa [#allocation6], 1
    %243 = vsyncpa [#allocation4], 1

</llo_original>
